<compile_context>
chip_gen: v6e
topology: v6e:2x2x1
jax: 0.10.0
libtpu: 0.0.40
codegen_flags: <defaults>
</compile_context>

<pallas_src>
import jax
import jax.numpy as jnp
from jax.experimental import pallas as pl
from jax.experimental.pallas import tpu as pltpu


def _posemb_layernorm_kernel(x_ref, pos_ref, gamma_ref, beta_ref, o_ref, *, eps):
    # x_ref / o_ref: (TB, TS, H)  batch-tile x sequence-tile block
    # pos_ref:       (TS, H)      position embedding rows for this sequence tile
    # gamma_ref:     (1, H)       LayerNorm weight
    # beta_ref:      (1, H)       LayerNorm bias
    x = x_ref[...].astype(jnp.float32)                      # (TB, TS, H)
    pos = pos_ref[...].astype(jnp.float32)                  # (TS, H)
    emb = x + pos[None, :, :]                                # (TB, TS, H)

    # One-pass LayerNorm statistics over the hidden axis (biased variance,
    # matching nn.LayerNorm). Keeps only `emb` live as a full-tile f32 temp.
    # Cross-lane reductions go to the XLU slot; rsqrt to the EUP slot.
    mean = jnp.mean(emb, axis=-1, keepdims=True)             # (TB, TS, 1)
    meansq = jnp.mean(emb * emb, axis=-1, keepdims=True)     # (TB, TS, 1)
    var = jnp.maximum(meansq - mean * mean, 0.0)             # clamp fp cancellation
    inv = jax.lax.rsqrt(var + eps)                           # (TB, TS, 1)

    gamma = gamma_ref[...].astype(jnp.float32)[None, :, :]   # (1, 1, H)
    beta = beta_ref[...].astype(jnp.float32)[None, :, :]     # (1, 1, H)

    # Dropout: identity in eval mode.
    # TODO(synk): training-mode dropout (pltpu.prng_seed + stateful_bernoulli) not wired.
    o_ref[...] = ((emb - mean) * inv * gamma + beta).astype(o_ref.dtype)


def _vmem_limit_bytes():
    """Generation-aware scoped-VMEM limit with headroom."""
    try:
        cap = int(getattr(pltpu.get_tpu_info(), "vmem_capacity_bytes", 64 * 1024 * 1024))
    except Exception:
        cap = 64 * 1024 * 1024  # conservative fallback (fits every generation)
    # v7x: 64 MiB physical -> 48 MiB; v5e/v6e: 128 MiB physical -> 96 MiB.
    return min((cap * 3) // 4, 96 * 1024 * 1024)


def _choose_tiles(B, S, H, x_itemsize, out_itemsize, pos_itemsize, vmem_limit):
    """Pick (TB, TS) blocks: as large as the VMEM budget allows, sublane aligned,
    preferring tile sizes that divide S/B (no ragged blocks), and keeping enough
    grid steps for dual-TC (v7x) balance."""
    budget = max(vmem_limit - 4 * 1024 * 1024, 1024 * 1024)
    # Per (batch-row x seq-row): x in + out (double buffered) + ~2 f32 temps
    # + pos (double buffered; over-counted per batch row -- harmless).
    per_row = H * (2 * x_itemsize + 2 * out_itemsize + 2 * 4 + 2 * pos_itemsize)
    max_rows = max(8, budget // max(per_row, 1))

    # --- sequence tile ---
    ts = min(S, max_rows)
    ts = max(8, (ts // 8) * 8)
    if ts >= S:
        ts = S  # single full-extent tile (block dim == array dim is always legal)
    else:
        # Prefer the largest multiple of 8 that divides S -> no ragged last block.
        for cand in range(ts, 7, -8):
            if S % cand == 0:
                ts = cand
                break
    num_s = pl.cdiv(S, ts)

    # --- batch tile: fuse batch rows when the sequence fits in one tile ---
    tb = 1
    if ts == S:
        tb = max(1, min(B, max_rows // max(ts, 1)))
        while B % tb != 0:  # keep batch blocks non-ragged
            tb -= 1
    num_b = pl.cdiv(B, tb)

    # --- v7x dual-TC balance: aim for >= 4 grid steps when splittable ---
    while num_s * num_b < 4 and ts > 8 and ts % 2 == 0 and (ts // 2) % 8 == 0:
        ts //= 2
        num_s = pl.cdiv(S, ts)

    return tb, ts, num_s, num_b


def position_embedding_forward(x, pos_table, gamma, beta, *, eps=1e-12):
    """x: (B, S, H); pos_table: (max_pos, H) with max_pos >= S; gamma/beta: (H,)."""
    B, S, H = x.shape
    out_dtype = x.dtype

    vmem_limit = _vmem_limit_bytes()
    TB, TS, num_s_tiles, num_b_tiles = _choose_tiles(
        B, S, H,
        jnp.dtype(x.dtype).itemsize,
        jnp.dtype(out_dtype).itemsize,
        jnp.dtype(pos_table.dtype).itemsize,
        vmem_limit,
    )

    gamma2 = gamma.reshape(1, H)
    beta2 = beta.reshape(1, H)

    kernel = lambda xr, pr, gr, br, orf: _posemb_layernorm_kernel(
        xr, pr, gr, br, orf, eps=eps)

    # Advisory cost: actual (unpadded) HBM traffic / flops.
    bytes_accessed = (
        B * S * H * (jnp.dtype(x.dtype).itemsize + jnp.dtype(out_dtype).itemsize)
        + S * H * jnp.dtype(pos_table.dtype).itemsize
        + 2 * H * 4
    )
    cost = pl.CostEstimate(
        flops=8 * B * S * H,
        transcendentals=B * S,            # one rsqrt per row
        bytes_accessed=int(bytes_accessed),
    )

    out = pl.pallas_call(
        kernel,
        out_shape=jax.ShapeDtypeStruct((B, S, H), out_dtype),
        grid_spec=pltpu.PrefetchScalarGridSpec(
            num_scalar_prefetch=0,
            # Batch tiles are the INNER (fastest-varying) grid axis: the pos
            # tile / gamma / beta block indices are constant across it, so they
            # are not re-DMA'd per batch tile.
            grid=(num_s_tiles, num_b_tiles),
            in_specs=[
                pl.BlockSpec((TB, TS, H), lambda s, b: (b, s, 0)),   # x
                pl.BlockSpec((TS, H), lambda s, b: (s, 0)),          # pos table rows
                pl.BlockSpec((1, H), lambda s, b: (0, 0)),           # gamma
                pl.BlockSpec((1, H), lambda s, b: (0, 0)),           # beta
            ],
            out_specs=pl.BlockSpec((TB, TS, H), lambda s, b: (b, s, 0)),
        ),
        compiler_params=pltpu.CompilerParams(
            dimension_semantics=("parallel", "parallel"),
            vmem_limit_bytes=int(vmem_limit),
        ),
        cost_estimate=cost,
    )(x, pos_table, gamma2, beta2)

    return out


def reference_forward(x, pos_table, gamma, beta, *, eps=1e-12):
    S = x.shape[1]
    emb = x + pos_table[:S][None, :, :]
    mean = jnp.mean(emb, axis=-1, keepdims=True)
    var = jnp.mean((emb - mean) ** 2, axis=-1, keepdims=True)
    return (emb - mean) * jax.lax.rsqrt(var + eps) * gamma + beta


if __name__ == "__main__":
    # Small config consistent with the module
    B, S, H = 2, 8, 32
    max_position_embeddings = 16
    layer_norm_eps = 1e-12

    key = jax.random.PRNGKey(0)
    k_x, k_emb = jax.random.split(key)

    x = jax.random.normal(k_x, (B, S, H), dtype=jnp.float32)
    # nn.Embedding weight ~ N(0,1); LayerNorm weight=1, bias=0 (PyTorch defaults)
    pos_table = jax.random.normal(k_emb, (max_position_embeddings, H), dtype=jnp.float32)
    gamma = jnp.ones((H,), dtype=jnp.float32)
    beta = jnp.zeros((H,), dtype=jnp.float32)

    out = position_embedding_forward(x, pos_table, gamma, beta, eps=layer_norm_eps)
    out = jax.block_until_ready(out)

    ref = reference_forward(x, pos_table, gamma, beta, eps=layer_norm_eps)
    assert out.shape == (B, S, H)
    assert jnp.allclose(out, ref, atol=1e-4, rtol=1e-4), "mismatch vs reference"

    print("KERNEL_OK")
</pallas_src>

<mosaic_0001>
module attributes {stable_mosaic.version = 11 : i64} {
  func.func @_lambda_(%arg0: i32, %arg1: i32, %arg2: memref<2x8x32xf32, #tpu.memory_space<vmem>>, %arg3: memref<8x32xf32, #tpu.memory_space<vmem>>, %arg4: memref<1x32xf32, #tpu.memory_space<vmem>>, %arg5: memref<1x32xf32, #tpu.memory_space<vmem>>, %arg6: memref<2x8x32xf32, #tpu.memory_space<vmem>>) attributes {dimension_semantics = [#tpu.dimension_semantics<parallel>, #tpu.dimension_semantics<parallel>], iteration_bounds = array<i64: 1, 1>, scalar_prefetch = 0 : i64, scratch_operands = 0 : i64, tpu.core_type = #tpu.core_type<tc>, window_params = [{transform_indices = @transform_0, window_bounds = array<i64: 2, 8, 32>}, {transform_indices = @transform_1, window_bounds = array<i64: 8, 32>}, {pipeline_mode = #tpu.pipeline_mode<synchronous>, transform_indices = @transform_2, window_bounds = array<i64: 1, 32>}, {pipeline_mode = #tpu.pipeline_mode<synchronous>, transform_indices = @transform_3, window_bounds = array<i64: 1, 32>}, {transform_indices = @transform_4, window_bounds = array<i64: 2, 8, 32>}]} {
    %c0 = arith.constant 0 : index
    %c0_0 = arith.constant 0 : index
    %c0_1 = arith.constant 0 : index
    %0 = vector.load %arg2[%c0, %c0_0, %c0_1] : memref<2x8x32xf32, #tpu.memory_space<vmem>>, vector<2x8x32xf32>
    %c0_2 = arith.constant 0 : index
    %c0_3 = arith.constant 0 : index
    %1 = vector.load %arg3[%c0_2, %c0_3] : memref<8x32xf32, #tpu.memory_space<vmem>>, vector<8x32xf32>
    %2 = vector.shape_cast %1 : vector<8x32xf32> to vector<1x8x32xf32>
    %3 = vector.broadcast %2 : vector<1x8x32xf32> to vector<2x8x32xf32>
    %4 = arith.addf %0, %3 : vector<2x8x32xf32>
    %cst = arith.constant dense<0.000000e+00> : vector<2x8xf32>
    %5 = vector.multi_reduction <add>, %4, %cst [2] : vector<2x8x32xf32> to vector<2x8xf32>
    %6 = vector.shape_cast %5 : vector<2x8xf32> to vector<2x8x1xf32>
    %cst_4 = arith.constant 3.200000e+01 : f32
    %7 = vector.broadcast %cst_4 : f32 to vector<2x8x1xf32>
    %8 = arith.divf %6, %7 : vector<2x8x1xf32>
    %9 = arith.mulf %4, %4 : vector<2x8x32xf32>
    %cst_5 = arith.constant dense<0.000000e+00> : vector<2x8xf32>
    %10 = vector.multi_reduction <add>, %9, %cst_5 [2] : vector<2x8x32xf32> to vector<2x8xf32>
    %11 = vector.shape_cast %10 : vector<2x8xf32> to vector<2x8x1xf32>
    %cst_6 = arith.constant 3.200000e+01 : f32
    %12 = vector.broadcast %cst_6 : f32 to vector<2x8x1xf32>
    %13 = arith.divf %11, %12 : vector<2x8x1xf32>
    %14 = arith.mulf %8, %8 : vector<2x8x1xf32>
    %15 = arith.subf %13, %14 : vector<2x8x1xf32>
    %cst_7 = arith.constant 0.000000e+00 : f32
    %16 = vector.broadcast %cst_7 : f32 to vector<2x8x1xf32>
    %17 = arith.maximumf %15, %16 : vector<2x8x1xf32>
    %cst_8 = arith.constant 9.99999996E-13 : f32
    %18 = vector.broadcast %cst_8 : f32 to vector<2x8x1xf32>
    %19 = arith.addf %17, %18 : vector<2x8x1xf32>
    %20 = math.rsqrt %19 : vector<2x8x1xf32>
    %c0_9 = arith.constant 0 : index
    %c0_10 = arith.constant 0 : index
    %21 = vector.load %arg4[%c0_9, %c0_10] : memref<1x32xf32, #tpu.memory_space<vmem>>, vector<1x32xf32>
    %22 = vector.shape_cast %21 : vector<1x32xf32> to vector<1x1x32xf32>
    %c0_11 = arith.constant 0 : index
    %c0_12 = arith.constant 0 : index
    %23 = vector.load %arg5[%c0_11, %c0_12] : memref<1x32xf32, #tpu.memory_space<vmem>>, vector<1x32xf32>
    %24 = vector.shape_cast %23 : vector<1x32xf32> to vector<1x1x32xf32>
    %25 = vector.broadcast %8 : vector<2x8x1xf32> to vector<2x8x32xf32>
    %26 = arith.subf %4, %25 : vector<2x8x32xf32>
    %27 = vector.broadcast %20 : vector<2x8x1xf32> to vector<2x8x32xf32>
    %28 = arith.mulf %26, %27 : vector<2x8x32xf32>
    %29 = vector.broadcast %22 : vector<1x1x32xf32> to vector<2x8x32xf32>
    %30 = arith.mulf %28, %29 : vector<2x8x32xf32>
    %31 = vector.broadcast %24 : vector<1x1x32xf32> to vector<2x8x32xf32>
    %32 = arith.addf %30, %31 : vector<2x8x32xf32>
    %c0_13 = arith.constant 0 : index
    %c0_14 = arith.constant 0 : index
    %c0_15 = arith.constant 0 : index
    %33 = vector.load %arg6[%c0_13, %c0_14, %c0_15] : memref<2x8x32xf32, #tpu.memory_space<vmem>>, vector<2x8x32xf32>
    tpu.vector_store %arg6[%c0_13, %c0_14, %c0_15], %32 {strides = array<i32>} : memref<2x8x32xf32, #tpu.memory_space<vmem>>, vector<2x8x32xf32>,
    return
  }
  func.func @transform_0(%arg0: i32, %arg1: i32) -> (i32, i32, i32) {
    %c0_i32 = arith.constant 0 : i32
    %c0_i32_0 = arith.constant 0 : i32
    return %arg1, %arg0, %c0_i32 : i32, i32, i32
  }
  func.func @transform_1(%arg0: i32, %arg1: i32) -> (i32, i32) {
    %c0_i32 = arith.constant 0 : i32
    %c0_i32_0 = arith.constant 0 : i32
    return %arg0, %c0_i32 : i32, i32
  }
  func.func @transform_2(%arg0: i32, %arg1: i32) -> (i32, i32) {
    %c0_i32 = arith.constant 0 : i32
    %c0_i32_0 = arith.constant 0 : i32
    %c0_i32_1 = arith.constant 0 : i32
    return %c0_i32, %c0_i32_0 : i32, i32
  }
  func.func @transform_3(%arg0: i32, %arg1: i32) -> (i32, i32) {
    %c0_i32 = arith.constant 0 : i32
    %c0_i32_0 = arith.constant 0 : i32
    %c0_i32_1 = arith.constant 0 : i32
    return %c0_i32, %c0_i32_0 : i32, i32
  }
  func.func @transform_4(%arg0: i32, %arg1: i32) -> (i32, i32, i32) {
    %c0_i32 = arith.constant 0 : i32
    %c0_i32_0 = arith.constant 0 : i32
    return %arg1, %arg0, %c0_i32 : i32, i32, i32
  }
}

</mosaic_0001>

<llo_original>
// kernel: tpu_custom_call.1
$region0: #{tpu_custom_call.1}
  #allocation0 [shape = 'u32[]', space=smem, size = 0x4, offset = 0x4, fixed_abs, tag = 'smem constant byte address 0x4 - core index']
  #allocation1 [shape = 'u32[144,128]{1,0:T(1,128)}', space=vmem, size = 0x12000, scoped, tag = 'internal scratch']
  %s0 = inlined_call_operand.hbm [shape: f32[2,8,32], index: 0, kind: input, shape index: {}]
  %s1 = inlined_call_operand.hbm [shape: f32[16,32], index: 1, kind: input, shape index: {}]
  %s2 = inlined_call_operand.vmem [shape: f32[1,32], index: 2, kind: input, shape index: {}]
  %s3 = inlined_call_operand.vmem [shape: f32[1,32], index: 3, kind: input, shape index: {}]
  %s4 = inlined_call_operand.hbm [shape: f32[2,8,32], index: 4, kind: output, shape index: {}]
  %s5 = sld [smem:[#allocation0]]
  $region34: #{tpu_custom_call.1} parent=0
    _
  %s7 = ssub.s32 1, %s5
  %s8 = scalar_select 0, %s7, %s5
  $region1: #{tpu_custom_call.1} parent=0
    #allocation2 [shape = 'u8[8192]{0}', space=vmem, size = 0x2000, scoped, tag = 'input window, operand 0, single buffered']
    #allocation3 [shape = 's32[1]{0}', space=sflag, size = 0x4, scoped, tag = 'scoped memory for tpu_custom_call.1']
    #allocation4 [shape = 's32[1]{0}', space=sflag, size = 0x4, scoped, tag = 'scoped memory for tpu_custom_call.1']
    #allocation5 [shape = 'u8[4096]{0}', space=vmem, size = 0x1000, scoped, tag = 'input window, operand 1, single buffered']
    #allocation6 [shape = 's32[1]{0}', space=sflag, size = 0x4, scoped, tag = 'scoped memory for tpu_custom_call.1']
    #allocation7 [shape = 'u8[8192]{0}', space=vmem, size = 0x2000, scoped, tag = 'output window, operand 0, single buffered']
    %9 = vsyncpa [#allocation3], 0
    %10 = vsyncpa [#allocation6], 0
    %11 = vsyncpa [#allocation4], 0
    // Predicated region
    $region2: #{tpu_custom_call.1} parent=1 // pred_check
      _
    $region3: #{tpu_custom_call.1} parent=1 // pred_check_branch
      %13 = sbr.rel (0) target = $region5
    $region4: #{tpu_custom_call.1} parent=1 // pred_region
      %s15 = ssub.s32 256, 256
      %16 = vsyncadd [#allocation3], %s15
      %s17 = sshll.u32 [#allocation2], 4
      %s18 = int_to_ptr.vmem [resolvable:$true] %s17
      %23 = dma.hbm_to_vmem [thread:$0]  %s0, 256, %s18, [#allocation3], 128, 128, 8
    $region5: #{tpu_custom_call.1} parent=1 // pred_fallthru
      _
    // Predicated region
    $region6: #{tpu_custom_call.1} parent=1 // pred_check
      _
    $region7: #{tpu_custom_call.1} parent=1 // pred_check_branch
      %25 = sbr.rel (0) target = $region9
    $region8: #{tpu_custom_call.1} parent=1 // pred_region
      %s27 = ssub.s32 128, 128
      %28 = vsyncadd [#allocation6], %s27
      %s30 = sshll.u32 [#allocation5], 4
      %s31 = int_to_ptr.vmem [resolvable:$true] %s30
      %33 = dma.hbm_to_vmem [thread:$0]  %s1, 128, %s31, [#allocation6]
    $region9: #{tpu_custom_call.1} parent=1 // pred_fallthru
      _
    // Predicated region
    $region10: #{tpu_custom_call.1} parent=1 // pred_check
      _
    $region11: #{tpu_custom_call.1} parent=1 // pred_check_branch
      %35 = sbr.rel (0) target = $region13
    $region12: #{tpu_custom_call.1} parent=1 // pred_region
      _
    $region13: #{tpu_custom_call.1} parent=1 // pred_fallthru
      _
    // Predicated region
    $region14: #{tpu_custom_call.1} parent=1 // pred_check
      _
    $region15: #{tpu_custom_call.1} parent=1 // pred_check_branch
      %37 = sbr.rel (0) target = $region17
    $region16: #{tpu_custom_call.1} parent=1 // pred_region
      _
    $region17: #{tpu_custom_call.1} parent=1 // pred_fallthru
      _
    // Predicated region
    $region18: #{tpu_custom_call.1} parent=1 // pred_check
      _
    $region19: #{tpu_custom_call.1} parent=1 // pred_check_branch
      %39 = sbr.rel (0) target = $region21
    $region20: #{tpu_custom_call.1} parent=1 // pred_region
      %40 = dma.done [#allocation3], 256
    $region21: #{tpu_custom_call.1} parent=1 // pred_fallthru
      _
    // Predicated region
    $region22: #{tpu_custom_call.1} parent=1 // pred_check
      _
    $region23: #{tpu_custom_call.1} parent=1 // pred_check_branch
      %42 = sbr.rel (0) target = $region25
    $region24: #{tpu_custom_call.1} parent=1 // pred_region
      %43 = dma.done [#allocation6], 128
    $region25: #{tpu_custom_call.1} parent=1 // pred_fallthru
      _
    %v44 = vld [vmem:[#allocation2] sm:$0xff]
    %v45 = vld [vmem:[#allocation2 + $0x8] sm:$0xff]
    %v46 = vld [vmem:[#allocation5] sm:$0xff]
    %v47 = vadd.f32 %v44, %v46
    %v48 = vadd.f32 %v45, %v46
    %vm49 = vcmask 261120
    %v50 = vsel %vm49, %v47, 0.0
    %51 = vadd.xlane.f32.xlu0 %v50
    %v52 = vpop.xlane.xlu0 %51
    %v53 = vsel %vm49, %v48, 0.0
    %54 = vadd.xlane.f32.xlu0 %v53
    %v55 = vpop.xlane.xlu0 %54
    %v56 = vrcp.pop 32.0
    %v57 = vmul.f32 %v52, %v56
    %v58 = vmul.f32 %v55, %v56
    %v59 = vmul.f32 %v47, %v47
    %v60 = vmul.f32 %v48, %v48
    %v61 = vsel %vm49, %v59, 0.0
    %62 = vadd.xlane.f32.xlu0 %v61
    %v63 = vpop.xlane.xlu0 %62
    %v64 = vsel %vm49, %v60, 0.0
    %65 = vadd.xlane.f32.xlu0 %v64
    %v66 = vpop.xlane.xlu0 %65
    %v67 = vmul.f32 %v63, %v56
    %v68 = vmul.f32 %v66, %v56
    %v69 = vmul.f32 %v57, %v57
    %v70 = vmul.f32 %v58, %v58
    %v71 = vsub.f32 %v67, %v69
    %v72 = vsub.f32 %v68, %v70
    %v73 = vmax.f32 %v71, 0.0
    %v74 = vmax.f32 %v72, 0.0
    %v75 = vadd.f32 %v73, 1e-12
    %v76 = vadd.f32 %v74, 1e-12
    %v77 = vrsqrt.pop %v75
    %v78 = vrsqrt.pop %v76
    %v79 = vld [vmem:[%s2] sm:$0x1]
    %v80 = vld [vmem:[%s3] sm:$0x1]
    %v81 = vsub.f32 %v47, %v57
    %v82 = vsub.f32 %v48, %v58
    %v83 = vmul.f32 %v81, %v77
    %v84 = vmul.f32 %v82, %v78
    %v86 = vlaneseq
    %v87 = vshrl.u32 %v86, 7
    %v88 = vsub.s32 0, %v87
    %v89 = vrot.slane %v79, %v88
    %v91 = vmul.f32 %v83, %v89
    %v92 = vmul.f32 %v84, %v89
    %v94 = vlaneseq
    %v95 = vshrl.u32 %v94, 7
    %v96 = vsub.s32 0, %v95
    %v97 = vrot.slane %v80, %v96
    %v99 = vadd.f32 %v91, %v97
    %v100 = vadd.f32 %v92, %v97
    %101 = vst.msk [vmem:[#allocation7] sm:$0xff] %vm49, %v99
    %102 = vst.msk [vmem:[#allocation7 + $0x8] sm:$0xff] %vm49, %v100
    // Predicated region
    $region26: #{tpu_custom_call.1} parent=1 // pred_check
      _
    $region27: #{tpu_custom_call.1} parent=1 // pred_check_branch
      %104 = sbr.rel (0) target = $region29
    $region28: #{tpu_custom_call.1} parent=1 // pred_region
      %s106 = ssub.s32 256, 256
      %107 = vsyncadd [#allocation4], %s106
      %s108 = sshll.u32 [#allocation7], 4
      %s109 = int_to_ptr.vmem [resolvable:$true] %s108
      %114 = dma.vmem_to_hbm [thread:$0]  %s109, 256, %s4, [#allocation4], 128, 128, 8
    $region29: #{tpu_custom_call.1} parent=1 // pred_fallthru
      _
    // Predicated region
    $region30: #{tpu_custom_call.1} parent=1 // pred_check
      _
    $region31: #{tpu_custom_call.1} parent=1 // pred_check_branch
      %116 = sbr.rel (0) target = $region33
    $region32: #{tpu_custom_call.1} parent=1 // pred_region
      %117 = dma.done [#allocation4], 256
    $region33: #{tpu_custom_call.1} parent=1 // pred_fallthru
      _
    %118 = vsyncpa [#allocation3], 1
    %119 = vsyncpa [#allocation6], 1
    %120 = vsyncpa [#allocation4], 1

</llo_original>
